<compile_context>
chip_gen: v7x
topology: tpu7x:2x2x1
jax: 0.10.0
libtpu: 0.0.40
codegen_flags: <defaults>
</compile_context>

<pallas_src>
import jax
import jax.numpy as jnp
from jax.experimental import pallas as pl
from jax.experimental.pallas import tpu as pltpu


# ------------------------------ tiling helpers ------------------------------

def _round_up(x, m):
    return ((x + m - 1) // m) * m


def _sublane(dtype):
    # Minimal second-minor granularity for a dtype (8 f32, 16 bf16, 32 fp8).
    return max(8, 32 // jnp.dtype(dtype).itemsize)


def _pick_div_tile(dim, target, gran=128):
    """Largest multiple of `gran` dividing `dim` that is <= max(target, gran).
    `dim` is already a multiple of `gran` (weights are pre-padded on the host),
    so this never falls back to an arbitrarily large full-dimension block."""
    t = min((max(target, gran) // gran) * gran, dim)
    while t > gran:
        if dim % t == 0:
            return t
        t -= gran
    return gran


def _pick_row_tile(m, target, gran):
    """Row tile: multiple of `gran`, <= target, minimizing padded rows
    (ties resolved toward the larger tile).  Returns (tile, padded_m)."""
    m = max(int(m), 1)
    best_t, best_pad = gran, _round_up(m, gran)
    limit = min(_round_up(target, gran), _round_up(m, gran))
    t = gran
    while t <= limit:
        p = _round_up(m, t)
        if p <= best_pad:
            best_t, best_pad = t, p
        t += gran
    return best_t, best_pad


# ----------------------- one-time host weight preparation -------------------

def prepare_linear_lora_params(w, bias, A, B, alpha, *,
                               compute_dtype=None, merge=False):
    """One-time HOST-side weight preparation (call once, NOT per forward).

    w:    (d_out, d_in)  frozen nn.Linear weight
    bias: (d_out,) or None
    A:    (d_in, r), B: (r, d_out), alpha: python scalar
    compute_dtype: store matmul inputs in this dtype (e.g. jnp.bfloat16 on
        v6e/v7x).  The kernel always accumulates in f32; bias/epilogue are f32.
    merge: fold DeltaW = alpha*(A@B) into the frozen weight (exact for a fixed
        adapter at inference); the kernel becomes a plain matmul+bias.
    """
    w = jnp.asarray(w)
    d_out, d_in = w.shape
    if bias is None:
        bias = jnp.zeros((d_out,), dtype=jnp.float32)
    A = jnp.asarray(A)
    B = jnp.asarray(B)

    w_t = w.T.astype(jnp.float32)                                 # (d_in, d_out)
    if merge:
        w_t = w_t + jnp.asarray(alpha, jnp.float32) * (
            A.astype(jnp.float32) @ B.astype(jnp.float32))

    wt_dtype = compute_dtype if compute_dtype is not None else w.dtype
    ab_dtype = compute_dtype if compute_dtype is not None else A.dtype

    # Pre-pad awkward dims to 128 multiples once, so per-call tiles never need
    # a full-dimension fallback (VMEM-safe on v7x's 64 MiB/TC).
    d_in_p, d_out_p = _round_up(d_in, 128), _round_up(d_out, 128)
    w_t = jnp.pad(w_t, ((0, d_in_p - d_in), (0, d_out_p - d_out)))
    bias2d = jnp.pad(jnp.asarray(bias).astype(jnp.float32),
                     (0, d_out_p - d_out)).reshape(1, d_out_p)

    params = dict(w_t=w_t.astype(wt_dtype), bias=bias2d,
                  d_in=d_in, d_out=d_out, merged=bool(merge))
    if not merge:
        b_scaled = jnp.asarray(alpha, jnp.float32) * B.astype(jnp.float32)
        A_p = jnp.pad(A.astype(jnp.float32), ((0, d_in_p - d_in), (0, 0)))
        B_p = jnp.pad(b_scaled, ((0, 0), (0, d_out_p - d_out)))
        params["A"] = A_p.astype(ab_dtype)
        params["B"] = B_p.astype(ab_dtype)
    return params


# --------------------------------- kernels ----------------------------------

def _linear_lora_kernel(x_ref, wt_ref, bias_ref, a_ref, b_ref, o_ref,
                        acc_ref, xa_ref):
    # x_ref:   (tm, tk)   activation tile
    # wt_ref:  (tk, tn)   frozen weight tile, layout (d_in, d_out)
    # bias_ref:(1,  tn)   f32 bias
    # a_ref:   (tk, r)    LoRA A tile
    # b_ref:   (r,  tn)   LoRA B tile (alpha pre-folded on the host)
    # acc_ref: (tm, tn) f32  base-matmul accumulator over the K axis
    # xa_ref:  (tm, r)  f32  x@A accumulator over the K axis, reused across j
    j = pl.program_id(1)
    k = pl.program_id(2)

    @pl.when(k == 0)
    def _():
        acc_ref[...] = jnp.zeros_like(acc_ref)

    x = x_ref[...]
    acc_ref[...] += jnp.dot(x, wt_ref[...], preferred_element_type=jnp.float32)

    # x@A is independent of j: compute it only on the first output-column tile
    # and reuse the finished result for all j > 0 (sequential grid, k innermost
    # means xa is complete before j == 1 of the same i starts).
    @pl.when((j == 0) & (k == 0))
    def _():
        xa_ref[...] = jnp.zeros_like(xa_ref)

    @pl.when(j == 0)
    def _():
        xa_ref[...] += jnp.dot(x, a_ref[...],
                               preferred_element_type=jnp.float32)

    @pl.when(k == pl.num_programs(2) - 1)
    def _():
        lora = jnp.dot(xa_ref[...], b_ref[...],
                       preferred_element_type=jnp.float32)
        o_ref[...] = (acc_ref[...] + lora + bias_ref[...]).astype(o_ref.dtype)


def _linear_bias_kernel(x_ref, wt_ref, bias_ref, o_ref, acc_ref):
    # Merged-weight path: plain tiled matmul + bias (P1 + P3).
    k = pl.program_id(2)

    @pl.when(k == 0)
    def _():
        acc_ref[...] = jnp.zeros_like(acc_ref)

    acc_ref[...] += jnp.dot(x_ref[...], wt_ref[...],
                            preferred_element_type=jnp.float32)

    @pl.when(k == pl.num_programs(2) - 1)
    def _():
        o_ref[...] = (acc_ref[...] + bias_ref[...]).astype(o_ref.dtype)


# --------------------------------- wrapper ----------------------------------

def linear_lora(x, params, *, tm=256, tn=512, tk=512, w_buffers=None):
    """y = x @ W^T + bias [+ alpha * (x @ A @ B)], one fused Pallas kernel.

    x: (batch, seq, d_in); params from prepare_linear_lora_params().
    w_buffers: optional pipeline depth (2-3) for the weight stream; sweep knob.
    """
    w_t, bias2d = params["w_t"], params["bias"]
    merged = params["merged"]
    d_in, d_out = params["d_in"], params["d_out"]
    d_in_p, d_out_p = w_t.shape
    batch, seq, _ = x.shape
    M = batch * seq
    out_dtype = x.dtype

    x2d = x.reshape(M, d_in)
    if x2d.dtype != w_t.dtype:
        # Activations are the small operand; weights are pre-stored in the
        # compute dtype on the host (no per-call weight cast).
        x2d = x2d.astype(w_t.dtype)
    if d_in_p != d_in:
        x2d = jnp.pad(x2d, ((0, 0), (0, d_in_p - d_in)))

    sub = _sublane(x2d.dtype)
    tm_eff, m_pad = _pick_row_tile(M, tm, sub)
    tn_eff = _pick_div_tile(d_out_p, tn, 128)
    tk_eff = _pick_div_tile(d_in_p, tk, 128)
    if m_pad != M:
        x2d = jnp.pad(x2d, ((0, m_pad - M), (0, 0)))

    grid = (m_pad // tm_eff, d_out_p // tn_eff, d_in_p // tk_eff)
    n_j = grid[1]

    # Dominant weight stream; optionally deepen its pipeline.
    wt_spec = pl.BlockSpec((tk_eff, tn_eff), lambda i, j, k: (k, j))
    if w_buffers is not None:
        try:
            wt_spec = pl.BlockSpec((tk_eff, tn_eff), lambda i, j, k: (k, j),
                                   pipeline_mode=pl.Buffered(int(w_buffers)))
        except TypeError:
            pass  # older jax without pipeline_mode; keep default double-buffer

    common_in_specs = [
        pl.BlockSpec((tm_eff, tk_eff), lambda i, j, k: (i, k)),   # x
        wt_spec,                                                  # W^T
        pl.BlockSpec((1, tn_eff), lambda i, j, k: (0, j)),        # bias
    ]
    out_spec = pl.BlockSpec((tm_eff, tn_eff), lambda i, j, k: (i, j))

    x_bytes = x2d.size * x2d.dtype.itemsize
    w_bytes = w_t.size * w_t.dtype.itemsize
    out_bytes = m_pad * d_out_p * jnp.dtype(out_dtype).itemsize
    if merged:
        flops = 2 * m_pad * d_in_p * d_out_p
        extra_bytes = 0
    else:
        r = params["A"].shape[1]
        flops = (2 * m_pad * d_in_p * d_out_p      # base matmul
                 + 2 * m_pad * d_in_p * r          # x@A (once per row strip)
                 + 2 * m_pad * r * d_out_p)        # xa@B epilogue
        extra_bytes = (params["A"].size * params["A"].dtype.itemsize
                       + params["B"].size * params["B"].dtype.itemsize)
    cost = pl.CostEstimate(
        flops=flops, transcendentals=0,
        bytes_accessed=x_bytes * n_j + w_bytes + bias2d.size * 4
        + extra_bytes + out_bytes)

    if merged:
        out2d = pl.pallas_call(
            _linear_bias_kernel,
            out_shape=jax.ShapeDtypeStruct((m_pad, d_out_p), out_dtype),
            grid_spec=pltpu.PrefetchScalarGridSpec(
                num_scalar_prefetch=0, grid=grid,
                in_specs=common_in_specs, out_specs=out_spec,
                scratch_shapes=[pltpu.VMEM((tm_eff, tn_eff), jnp.float32)]),
            compiler_params=pltpu.CompilerParams(
                dimension_semantics=("parallel", "parallel", "arbitrary")),
            cost_estimate=cost,
        )(x2d, w_t, bias2d)
    else:
        A, B = params["A"], params["B"]
        r = A.shape[1]
        out2d = pl.pallas_call(
            _linear_lora_kernel,
            out_shape=jax.ShapeDtypeStruct((m_pad, d_out_p), out_dtype),
            grid_spec=pltpu.PrefetchScalarGridSpec(
                num_scalar_prefetch=0, grid=grid,
                in_specs=common_in_specs + [
                    pl.BlockSpec((tk_eff, r), lambda i, j, k: (k, 0)),   # A
                    pl.BlockSpec((r, tn_eff), lambda i, j, k: (0, j)),   # alpha*B
                ],
                out_specs=out_spec,
                scratch_shapes=[
                    pltpu.VMEM((tm_eff, tn_eff), jnp.float32),  # base acc
                    pltpu.VMEM((tm_eff, r), jnp.float32),       # x@A (shared j)
                ]),
            # The j axis carries the xa-scratch dependency: keep it off the
            # v7x megacore split (i stays the parallel axis; measured impact
            # of parallel-vs-arbitrary elsewhere is ~zero).
            compiler_params=pltpu.CompilerParams(
                dimension_semantics=("parallel", "arbitrary", "arbitrary")),
            cost_estimate=cost,
        )(x2d, w_t, bias2d, A, B)

    if m_pad != M or d_out_p != d_out:
        out2d = out2d[:M, :d_out]
    return out2d.reshape(batch, seq, d_out)


# ---------------------------------- tests -----------------------------------

if __name__ == "__main__":
    batch, seq = 2, 8
    d_in, d_out, r = 256, 256, 8
    alpha = 2.0

    key = jax.random.PRNGKey(0)
    kx, kw, kb, ka, kbb = jax.random.split(key, 5)

    x = jax.random.normal(kx, (batch, seq, d_in), dtype=jnp.float32)
    # Frozen nn.Linear(in_features=d_in, out_features=d_out).
    w = jax.random.normal(kw, (d_out, d_in), dtype=jnp.float32) * 0.02
    bias = jax.random.normal(kb, (d_out,), dtype=jnp.float32) * 0.02
    # LoRALayer init: A = randn(in, r)/sqrt(r); B is zeros in the module, but a
    # nonzero B is used here so the LoRA branch is numerically validated.
    A = jax.random.normal(ka, (d_in, r), dtype=jnp.float32) / jnp.sqrt(float(r))
    B = jax.random.normal(kbb, (r, d_out), dtype=jnp.float32) * 0.05

    def ref(x, w, bias, A, B, alpha):
        return x @ w.T + bias + alpha * ((x @ A) @ B)

    want = ref(x, w, bias, A, B, alpha)

    # 1) f32 fused path (tight check).
    p_f32 = prepare_linear_lora_params(w, bias, A, B, alpha)
    got = jax.block_until_ready(linear_lora(x, p_f32))
    assert got.shape == (batch, seq, d_out)
    assert jnp.allclose(got, want, atol=1e-4, rtol=1e-4)

    # 2) bf16 matmul-input path (weights pre-cast ONCE on the host; f32 accum).
    p_bf16 = prepare_linear_lora_params(w, bias, A, B, alpha,
                                        compute_dtype=jnp.bfloat16)
    got_bf16 = jax.block_until_ready(linear_lora(x, p_bf16))
    assert got_bf16.shape == (batch, seq, d_out)
    assert jnp.allclose(got_bf16, want, atol=1e-1, rtol=1e-1)

    # 3) merged-inference path (DeltaW folded into W^T; plain matmul+bias).
    p_merged = prepare_linear_lora_params(w, bias, A, B, alpha, merge=True)
    got_m = jax.block_until_ready(linear_lora(x, p_merged))
    assert jnp.allclose(got_m, want, atol=1e-3, rtol=1e-3)

    # 4) awkward (non-128-multiple) dims + ragged M exercise the padding path.
    d_in2, d_out2, seq2 = 192, 320, 5
    x2 = jax.random.normal(kx, (batch, seq2, d_in2), dtype=jnp.float32)
    w2 = jax.random.normal(kw, (d_out2, d_in2), dtype=jnp.float32) * 0.02
    b2 = jax.random.normal(kb, (d_out2,), dtype=jnp.float32) * 0.02
    A2 = jax.random.normal(ka, (d_in2, r), dtype=jnp.float32) / jnp.sqrt(float(r))
    B2 = jax.random.normal(kbb, (r, d_out2), dtype=jnp.float32) * 0.05
    p2 = prepare_linear_lora_params(w2, b2, A2, B2, alpha)
    got2 = jax.block_until_ready(linear_lora(x2, p2))
    assert got2.shape == (batch, seq2, d_out2)
    assert jnp.allclose(got2, ref(x2, w2, b2, A2, B2, alpha),
                        atol=1e-4, rtol=1e-4)

    print("KERNEL_OK")
</pallas_src>

<mosaic_0001>
module attributes {stable_mosaic.version = 11 : i64} {
  func.func @_linear_lora_kernel(%arg0: i32, %arg1: i32, %arg2: i32, %arg3: memref<16x256xf32, #tpu.memory_space<vmem>>, %arg4: memref<256x256xf32, #tpu.memory_space<vmem>>, %arg5: memref<1x256xf32, #tpu.memory_space<vmem>>, %arg6: memref<256x8xf32, #tpu.memory_space<vmem>>, %arg7: memref<8x256xf32, #tpu.memory_space<vmem>>, %arg8: memref<16x256xf32, #tpu.memory_space<vmem>>, %arg9: memref<16x256xf32, #tpu.memory_space<vmem>>, %arg10: memref<16x8xf32, #tpu.memory_space<vmem>>) attributes {dimension_semantics = [#tpu.dimension_semantics<parallel>, #tpu.dimension_semantics<arbitrary>, #tpu.dimension_semantics<arbitrary>], iteration_bounds = array<i64: 1, 1, 1>, scalar_prefetch = 0 : i64, scratch_operands = 2 : i64, tpu.core_type = #tpu.core_type<tc>, window_params = [{transform_indices = @transform_0, window_bounds = array<i64: 16, 256>}, {transform_indices = @transform_1, window_bounds = array<i64: 256, 256>}, {transform_indices = @transform_2, window_bounds = array<i64: 1, 256>}, {transform_indices = @transform_3, window_bounds = array<i64: 256, 8>}, {transform_indices = @transform_4, window_bounds = array<i64: 8, 256>}, {transform_indices = @transform_5, window_bounds = array<i64: 16, 256>}]} {
    %c0_i32 = arith.constant 0 : i32
    %0 = arith.cmpi eq, %arg2, %c0_i32 : i32
    %1 = arith.extui %0 : i1 to i32
    %c0_i32_0 = arith.constant 0 : i32
    %2 = arith.cmpi ne, %1, %c0_i32_0 : i32
    scf.if %2 {
      %cst_15 = arith.constant 0.000000e+00 : f32
      %20 = vector.broadcast %cst_15 : f32 to vector<16x256xf32>
      %c0_16 = arith.constant 0 : index
      %c0_17 = arith.constant 0 : index
      %21 = vector.load %arg9[%c0_16, %c0_17] : memref<16x256xf32, #tpu.memory_space<vmem>>, vector<16x256xf32>
      tpu.vector_store %arg9[%c0_16, %c0_17], %20 {strides = array<i32>} : memref<16x256xf32, #tpu.memory_space<vmem>>, vector<16x256xf32>,
    } else {
    }
    %c0 = arith.constant 0 : index
    %c0_1 = arith.constant 0 : index
    %3 = vector.load %arg3[%c0, %c0_1] : memref<16x256xf32, #tpu.memory_space<vmem>>, vector<16x256xf32>
    %c0_2 = arith.constant 0 : index
    %c0_3 = arith.constant 0 : index
    %4 = vector.load %arg9[%c0_2, %c0_3] : memref<16x256xf32, #tpu.memory_space<vmem>>, vector<16x256xf32>
    %c0_4 = arith.constant 0 : index
    %c0_5 = arith.constant 0 : index
    %5 = vector.load %arg4[%c0_4, %c0_5] : memref<256x256xf32, #tpu.memory_space<vmem>>, vector<256x256xf32>
    %cst = arith.constant dense<0.000000e+00> : vector<16x256xf32>
    %6 = tpu.matmul %3, %5, %cst {dimension_numbers = #tpu.dot_dimension_numbers<[1], [0], [0], [1], [0, 0, 1, 1], [], []>} : vector<16x256xf32>, vector<256x256xf32>, vector<16x256xf32> -> vector<16x256xf32>
    %7 = arith.addf %4, %6 : vector<16x256xf32>
    %c0_6 = arith.constant 0 : index
    %c0_7 = arith.constant 0 : index
    %8 = vector.load %arg9[%c0_6, %c0_7] : memref<16x256xf32, #tpu.memory_space<vmem>>, vector<16x256xf32>
    tpu.vector_store %arg9[%c0_6, %c0_7], %7 {strides = array<i32>} : memref<16x256xf32, #tpu.memory_space<vmem>>, vector<16x256xf32>,
    %c0_i32_8 = arith.constant 0 : i32
    %9 = arith.cmpi eq, %arg1, %c0_i32_8 : i32
    %c0_i32_9 = arith.constant 0 : i32
    %10 = arith.cmpi eq, %arg2, %c0_i32_9 : i32
    %11 = arith.andi %9, %10 : i1
    %12 = arith.extui %11 : i1 to i32
    %c0_i32_10 = arith.constant 0 : i32
    %13 = arith.cmpi ne, %12, %c0_i32_10 : i32
    scf.if %13 {
      %cst_15 = arith.constant 0.000000e+00 : f32
      %20 = vector.broadcast %cst_15 : f32 to vector<16x8xf32>
      %c0_16 = arith.constant 0 : index
      %c0_17 = arith.constant 0 : index
      %21 = vector.load %arg10[%c0_16, %c0_17] : memref<16x8xf32, #tpu.memory_space<vmem>>, vector<16x8xf32>
      tpu.vector_store %arg10[%c0_16, %c0_17], %20 {strides = array<i32>} : memref<16x8xf32, #tpu.memory_space<vmem>>, vector<16x8xf32>,
    } else {
    }
    %c0_i32_11 = arith.constant 0 : i32
    %14 = arith.cmpi eq, %arg1, %c0_i32_11 : i32
    %15 = arith.extui %14 : i1 to i32
    %c0_i32_12 = arith.constant 0 : i32
    %16 = arith.cmpi ne, %15, %c0_i32_12 : i32
    scf.if %16 {
      %c0_15 = arith.constant 0 : index
      %c0_16 = arith.constant 0 : index
      %20 = vector.load %arg10[%c0_15, %c0_16] : memref<16x8xf32, #tpu.memory_space<vmem>>, vector<16x8xf32>
      %c0_17 = arith.constant 0 : index
      %c0_18 = arith.constant 0 : index
      %21 = vector.load %arg6[%c0_17, %c0_18] : memref<256x8xf32, #tpu.memory_space<vmem>>, vector<256x8xf32>
      %cst_19 = arith.constant dense<0.000000e+00> : vector<16x8xf32>
      %22 = tpu.matmul %3, %21, %cst_19 {dimension_numbers = #tpu.dot_dimension_numbers<[1], [0], [0], [1], [0, 0, 1, 1], [], []>} : vector<16x256xf32>, vector<256x8xf32>, vector<16x8xf32> -> vector<16x8xf32>
      %23 = arith.addf %20, %22 : vector<16x8xf32>
      %c0_20 = arith.constant 0 : index
      %c0_21 = arith.constant 0 : index
      %24 = vector.load %arg10[%c0_20, %c0_21] : memref<16x8xf32, #tpu.memory_space<vmem>>, vector<16x8xf32>
      tpu.vector_store %arg10[%c0_20, %c0_21], %23 {strides = array<i32>} : memref<16x8xf32, #tpu.memory_space<vmem>>, vector<16x8xf32>,
    } else {
    }
    %c0_i32_13 = arith.constant 0 : i32
    %17 = arith.cmpi eq, %arg2, %c0_i32_13 : i32
    %18 = arith.extui %17 : i1 to i32
    %c0_i32_14 = arith.constant 0 : i32
    %19 = arith.cmpi ne, %18, %c0_i32_14 : i32
    scf.if %19 {
      %c0_15 = arith.constant 0 : index
      %c0_16 = arith.constant 0 : index
      %20 = vector.load %arg10[%c0_15, %c0_16] : memref<16x8xf32, #tpu.memory_space<vmem>>, vector<16x8xf32>
      %c0_17 = arith.constant 0 : index
      %c0_18 = arith.constant 0 : index
      %21 = vector.load %arg7[%c0_17, %c0_18] : memref<8x256xf32, #tpu.memory_space<vmem>>, vector<8x256xf32>
      %cst_19 = arith.constant dense<0.000000e+00> : vector<16x256xf32>
      %22 = tpu.matmul %20, %21, %cst_19 {dimension_numbers = #tpu.dot_dimension_numbers<[1], [0], [0], [1], [0, 0, 1, 1], [], []>} : vector<16x8xf32>, vector<8x256xf32>, vector<16x256xf32> -> vector<16x256xf32>
      %c0_20 = arith.constant 0 : index
      %c0_21 = arith.constant 0 : index
      %23 = vector.load %arg9[%c0_20, %c0_21] : memref<16x256xf32, #tpu.memory_space<vmem>>, vector<16x256xf32>
      %24 = arith.addf %23, %22 : vector<16x256xf32>
      %c0_22 = arith.constant 0 : index
      %c0_23 = arith.constant 0 : index
      %25 = vector.load %arg5[%c0_22, %c0_23] : memref<1x256xf32, #tpu.memory_space<vmem>>, vector<1x256xf32>
      %26 = vector.broadcast %25 : vector<1x256xf32> to vector<16x256xf32>
      %27 = arith.addf %24, %26 : vector<16x256xf32>
      %c0_24 = arith.constant 0 : index
      %c0_25 = arith.constant 0 : index
      %28 = vector.load %arg8[%c0_24, %c0_25] : memref<16x256xf32, #tpu.memory_space<vmem>>, vector<16x256xf32>
      tpu.vector_store %arg8[%c0_24, %c0_25], %27 {strides = array<i32>} : memref<16x256xf32, #tpu.memory_space<vmem>>, vector<16x256xf32>,
    } else {
    }
    return
  }
  func.func @transform_0(%arg0: i32, %arg1: i32, %arg2: i32) -> (i32, i32) {
    %c0_i32 = arith.constant 0 : i32
    return %arg0, %arg2 : i32, i32
  }
  func.func @transform_1(%arg0: i32, %arg1: i32, %arg2: i32) -> (i32, i32) {
    %c0_i32 = arith.constant 0 : i32
    return %arg2, %arg1 : i32, i32
  }
  func.func @transform_2(%arg0: i32, %arg1: i32, %arg2: i32) -> (i32, i32) {
    %c0_i32 = arith.constant 0 : i32
    %c0_i32_0 = arith.constant 0 : i32
    return %c0_i32, %arg1 : i32, i32
  }
  func.func @transform_3(%arg0: i32, %arg1: i32, %arg2: i32) -> (i32, i32) {
    %c0_i32 = arith.constant 0 : i32
    %c0_i32_0 = arith.constant 0 : i32
    return %arg2, %c0_i32 : i32, i32
  }
  func.func @transform_4(%arg0: i32, %arg1: i32, %arg2: i32) -> (i32, i32) {
    %c0_i32 = arith.constant 0 : i32
    %c0_i32_0 = arith.constant 0 : i32
    return %c0_i32, %arg1 : i32, i32
  }
  func.func @transform_5(%arg0: i32, %arg1: i32, %arg2: i32) -> (i32, i32) {
    %c0_i32 = arith.constant 0 : i32
    return %arg0, %arg1 : i32, i32
  }
}

</mosaic_0001>

<llo_original>
// kernel: tpu_custom_call.1
$region0: #{tpu_custom_call.1}
  #allocation0 [shape = 'u32[]', space=smem, size = 0x4, offset = 0x4, fixed_abs, tag = 'smem constant byte address 0x4 - core index']
  #allocation1 [shape = 'u32[144,128]{1,0:T(1,128)}', space=vmem, size = 0x12000, scoped, tag = 'internal scratch']
  #allocation2 [shape = 'f32[16,256]{1,0:T(8,128)}', space=vmem, size = 0x4000, scoped, tag = 'scratch operand']
  #allocation3 [shape = 'f32[16,8]{1,0:T(8,128)}', space=vmem, size = 0x2000, scoped, tag = 'scratch operand']
  %s0 = inlined_call_operand.vmem [shape: f32[16,256], index: 0, kind: input, shape index: {}]
  %s1 = inlined_call_operand.hbm [shape: f32[256,256], index: 1, kind: input, shape index: {}]
  %s2 = inlined_call_operand.vmem [shape: f32[1,256], index: 2, kind: input, shape index: {}]
  %s3 = inlined_call_operand.vmem [shape: f32[256,8], index: 3, kind: input, shape index: {}]
  %s4 = inlined_call_operand.vmem [shape: f32[8,256], index: 4, kind: input, shape index: {}]
  %s5 = inlined_call_operand.hbm [shape: f32[16,256], index: 5, kind: output, shape index: {}]
  %s6 = sld [smem:[#allocation0]]
  $region50: #{tpu_custom_call.1} parent=0
    _
  %s8 = ssub.s32 1, %s6
  %s9 = scalar_select 0, %s8, %s6
  $region1: #{tpu_custom_call.1} parent=0
    #allocation4 [shape = 'u8[262144]{0}', space=vmem, size = 0x40000, scoped, tag = 'input window, operand 1, single buffered']
    #allocation5 [shape = 's32[1]{0}', space=sflag, size = 0x4, scoped, tag = 'scoped memory for tpu_custom_call.1']
    #allocation6 [shape = 's32[1]{0}', space=sflag, size = 0x4, scoped, tag = 'scoped memory for tpu_custom_call.1']
    #allocation7 [shape = 'u8[16384]{0}', space=vmem, size = 0x4000, scoped, tag = 'output window, operand 0, single buffered']
    %10 = vsyncpa [#allocation5], 0
    %11 = vsyncpa [#allocation6], 0
    // Predicated region
    $region2: #{tpu_custom_call.1} parent=1 // pred_check
      _
    $region3: #{tpu_custom_call.1} parent=1 // pred_check_branch
      %13 = sbr.rel (0) target = $region5
    $region4: #{tpu_custom_call.1} parent=1 // pred_region
      _
    $region5: #{tpu_custom_call.1} parent=1 // pred_fallthru
      _
    // Predicated region
    $region6: #{tpu_custom_call.1} parent=1 // pred_check
      _
    $region7: #{tpu_custom_call.1} parent=1 // pred_check_branch
      %15 = sbr.rel (0) target = $region9
    $region8: #{tpu_custom_call.1} parent=1 // pred_region
      %s17 = ssub.s32 8192, 8192
      %18 = vsyncadd [#allocation5], %s17
      %s19 = sshll.u32 [#allocation4], 4
      %s20 = int_to_ptr.vmem [resolvable:$true] %s19
      %25 = dma.hbm_to_vmem [thread:$0]  %s1, 8192, %s20, [#allocation5], 256, 256, 16
    $region9: #{tpu_custom_call.1} parent=1 // pred_fallthru
      _
    // Predicated region
    $region10: #{tpu_custom_call.1} parent=1 // pred_check
      _
    $region11: #{tpu_custom_call.1} parent=1 // pred_check_branch
      %27 = sbr.rel (0) target = $region13
    $region12: #{tpu_custom_call.1} parent=1 // pred_region
      _
    $region13: #{tpu_custom_call.1} parent=1 // pred_fallthru
      _
    // Predicated region
    $region14: #{tpu_custom_call.1} parent=1 // pred_check
      _
    $region15: #{tpu_custom_call.1} parent=1 // pred_check_branch
      %29 = sbr.rel (0) target = $region17
    $region16: #{tpu_custom_call.1} parent=1 // pred_region
      _
    $region17: #{tpu_custom_call.1} parent=1 // pred_fallthru
      _
    // Predicated region
    $region18: #{tpu_custom_call.1} parent=1 // pred_check
      _
    $region19: #{tpu_custom_call.1} parent=1 // pred_check_branch
      %31 = sbr.rel (0) target = $region21
    $region20: #{tpu_custom_call.1} parent=1 // pred_region
      _
    $region21: #{tpu_custom_call.1} parent=1 // pred_fallthru
      _
    // Predicated region
    $region22: #{tpu_custom_call.1} parent=1 // pred_check
      _
    $region23: #{tpu_custom_call.1} parent=1 // pred_check_branch
      %33 = sbr.rel (0) target = $region25
    $region24: #{tpu_custom_call.1} parent=1 // pred_region
      %34 = dma.done [#allocation5], 8192
    $region25: #{tpu_custom_call.1} parent=1 // pred_fallthru
      _
    %p35 = scmp.eq.s32.totalorder 0, 0
    // Predicated region
    $region26: #{tpu_custom_call.1} parent=1 // pred_check
      %p36 = pneg %p35
    $region27: #{tpu_custom_call.1} parent=1 // pred_check_branch
      %38 = sbr.rel (%p36) target = $region29
    $region28: #{tpu_custom_call.1} parent=1 // pred_region
      %39 = vst [vmem:[#allocation2] sm:$0xff] 0.0
      %40 = vst [vmem:[#allocation2 + $0x8] sm:$0xff] 0.0
      %41 = vst [vmem:[#allocation2 + $0x10] sm:$0xff] 0.0
      %42 = vst [vmem:[#allocation2 + $0x18] sm:$0xff] 0.0
    $region29: #{tpu_custom_call.1} parent=1 // pred_fallthru
      _
    %v43 = vld [vmem:[%s0] sm:$0xff]
    %v44 = vld [vmem:[%s0 + $0x8] sm:$0xff]
    %v45 = vld [vmem:[%s0 + $0x10] sm:$0xff]
    %v46 = vld [vmem:[%s0 + $0x18] sm:$0xff]
    %v47 = vld [vmem:[#allocation2] sm:$0xff]
    %v48 = vld [vmem:[#allocation2 + $0x8] sm:$0xff]
    %v49 = vld [vmem:[#allocation2 + $0x10] sm:$0xff]
    %v50 = vld [vmem:[#allocation2 + $0x18] sm:$0xff]
    %v51 = vld [vmem:[#allocation4] sm:$0xff]
    %v52 = vld [vmem:[#allocation4 + $0x8] sm:$0xff]
    %v53 = vld [vmem:[#allocation4 + $0x10] sm:$0xff]
    %v54 = vld [vmem:[#allocation4 + $0x18] sm:$0xff]
    %v55 = vld [vmem:[#allocation4 + $0x20] sm:$0xff]
    %v56 = vld [vmem:[#allocation4 + $0x28] sm:$0xff]
    %v57 = vld [vmem:[#allocation4 + $0x30] sm:$0xff]
    %v58 = vld [vmem:[#allocation4 + $0x38] sm:$0xff]
    %v59 = vld [vmem:[#allocation4 + $0x40] sm:$0xff]
    %v60 = vld [vmem:[#allocation4 + $0x48] sm:$0xff]
    %v61 = vld [vmem:[#allocation4 + $0x50] sm:$0xff]
    %v62 = vld [vmem:[#allocation4 + $0x58] sm:$0xff]
    %v63 = vld [vmem:[#allocation4 + $0x60] sm:$0xff]
    %v64 = vld [vmem:[#allocation4 + $0x68] sm:$0xff]
    %v65 = vld [vmem:[#allocation4 + $0x70] sm:$0xff]
    %v66 = vld [vmem:[#allocation4 + $0x78] sm:$0xff]
    %v67 = vld [vmem:[#allocation4 + $0x80] sm:$0xff]
    %v68 = vld [vmem:[#allocation4 + $0x88] sm:$0xff]
    %v69 = vld [vmem:[#allocation4 + $0x90] sm:$0xff]
    %v70 = vld [vmem:[#allocation4 + $0x98] sm:$0xff]
    %v71 = vld [vmem:[#allocation4 + $0xa0] sm:$0xff]
    %v72 = vld [vmem:[#allocation4 + $0xa8] sm:$0xff]
    %v73 = vld [vmem:[#allocation4 + $0xb0] sm:$0xff]
    %v74 = vld [vmem:[#allocation4 + $0xb8] sm:$0xff]
    %v75 = vld [vmem:[#allocation4 + $0xc0] sm:$0xff]
    %v76 = vld [vmem:[#allocation4 + $0xc8] sm:$0xff]
    %v77 = vld [vmem:[#allocation4 + $0xd0] sm:$0xff]
    %v78 = vld [vmem:[#allocation4 + $0xd8] sm:$0xff]
    %v79 = vld [vmem:[#allocation4 + $0xe0] sm:$0xff]
    %v80 = vld [vmem:[#allocation4 + $0xe8] sm:$0xff]
    %v81 = vld [vmem:[#allocation4 + $0xf0] sm:$0xff]
    %v82 = vld [vmem:[#allocation4 + $0xf8] sm:$0xff]
    %v83 = vld [vmem:[#allocation4 + $0x100] sm:$0xff]
    %v84 = vld [vmem:[#allocation4 + $0x108] sm:$0xff]
    %v85 = vld [vmem:[#allocation4 + $0x110] sm:$0xff]
    %v86 = vld [vmem:[#allocation4 + $0x118] sm:$0xff]
    %v87 = vld [vmem:[#allocation4 + $0x120] sm:$0xff]
    %v88 = vld [vmem:[#allocation4 + $0x128] sm:$0xff]
    %v89 = vld [vmem:[#allocation4 + $0x130] sm:$0xff]
    %v90 = vld [vmem:[#allocation4 + $0x138] sm:$0xff]
    %v91 = vld [vmem:[#allocation4 + $0x140] sm:$0xff]
    %v92 = vld [vmem:[#allocation4 + $0x148] sm:$0xff]
    %v93 = vld [vmem:[#allocation4 + $0x150] sm:$0xff]
    %v94 = vld [vmem:[#allocation4 + $0x158] sm:$0xff]
    %v95 = vld [vmem:[#allocation4 + $0x160] sm:$0xff]
    %v96 = vld [vmem:[#allocation4 + $0x168] sm:$0xff]
    %v97 = vld [vmem:[#allocation4 + $0x170] sm:$0xff]
    %v98 = vld [vmem:[#allocation4 + $0x178] sm:$0xff]
    %v99 = vld [vmem:[#allocation4 + $0x180] sm:$0xff]
    %v100 = vld [vmem:[#allocation4 + $0x188] sm:$0xff]
    %v101 = vld [vmem:[#allocation4 + $0x190] sm:$0xff]
    %v102 = vld [vmem:[#allocation4 + $0x198] sm:$0xff]
    %v103 = vld [vmem:[#allocation4 + $0x1a0] sm:$0xff]
    %v104 = vld [vmem:[#allocation4 + $0x1a8] sm:$0xff]
    %v105 = vld [vmem:[#allocation4 + $0x1b0] sm:$0xff]
    %v106 = vld [vmem:[#allocation4 + $0x1b8] sm:$0xff]
    %v107 = vld [vmem:[#allocation4 + $0x1c0] sm:$0xff]
    %v108 = vld [vmem:[#allocation4 + $0x1c8] sm:$0xff]
    %v109 = vld [vmem:[#allocation4 + $0x1d0] sm:$0xff]
    %v110 = vld [vmem:[#allocation4 + $0x1d8] sm:$0xff]
    %v111 = vld [vmem:[#allocation4 + $0x1e0] sm:$0xff]
    %v112 = vld [vmem:[#allocation4 + $0x1e8] sm:$0xff]
    %v113 = vld [vmem:[#allocation4 + $0x1f0] sm:$0xff]
    %v114 = vld [vmem:[#allocation4 + $0x1f8] sm:$0xff]
    %115 = vmatprep.subr.mxu0 %v52
    %116 = vmatpush1.msra.mxu0 %v51
    %117 = vmatprep.subr.mxu0 %v54
    %118 = vmatpush1.msra.mxu0 %v53
    %119 = vmatprep.subr.mxu0 %v56
    %120 = vmatpush1.msra.mxu0 %v55
    %121 = vmatprep.subr.mxu0 %v58
    %122 = vmatpush1.msra.mxu0 %v57
    %123 = vmatprep.subr.mxu0 %v60
    %124 = vmatpush1.msra.mxu0 %v59
    %125 = vmatprep.subr.mxu0 %v62
    %126 = vmatpush1.msra.mxu0 %v61
    %127 = vmatprep.subr.mxu0 %v64
    %128 = vmatpush1.msra.mxu0 %v63
    %129 = vmatprep.subr.mxu0 %v66
    %130 = vmatpush1.msra.mxu0 %v65
    %131 = vmatprep.subr.mxu0 %v68
    %132 = vmatpush1.msra.mxu0 %v67
    %133 = vmatprep.subr.mxu0 %v70
    %134 = vmatpush1.msra.mxu0 %v69
    %135 = vmatprep.subr.mxu0 %v72
    %136 = vmatpush1.msra.mxu0 %v71
    %137 = vmatprep.subr.mxu0 %v74
    %138 = vmatpush1.msra.mxu0 %v73
    %139 = vmatprep.subr.mxu0 %v76
    %140 = vmatpush1.msra.mxu0 %v75
    %141 = vmatprep.subr.mxu0 %v78
    %142 = vmatpush1.msra.mxu0 %v77
    %143 = vmatprep.subr.mxu0 %v80
    %144 = vmatpush1.msra.mxu0 %v79
    %145 = vmatprep.subr.mxu0 %v82
    %146 = vmatpush1.msra.mxu0 %v81
    %147 = vmatprep.subr.mxu0 %v84
    %148 = vmatpush1.msra.mxu0 %v83
    %149 = vmatprep.subr.mxu0 %v86
    %150 = vmatpush1.msra.mxu0 %v85
    %151 = vmatprep.subr.mxu0 %v88
    %152 = vmatpush1.msra.mxu0 %v87
    %153 = vmatprep.subr.mxu0 %v90
    %154 = vmatpush1.msra.mxu0 %v89
    %155 = vmatprep.subr.mxu0 %v92
    %156 = vmatpush1.msra.mxu0 %v91
    %157 = vmatprep.subr.mxu0 %v94
    %158 = vmatpush1.msra.mxu0 %v93
    %159 = vmatprep.subr.mxu0 %v96
    %160 = vmatpush1.msra.mxu0 %v95
    %161 = vmatprep.subr.mxu0 %v98
    %162 = vmatpush1.msra.mxu0 %v97
    %163 = vmatprep.subr.mxu0 %v100
    %164 = vmatpush1.msra.mxu0 %v99
    %165 = vmatprep.subr.mxu0 %v102
    %166 = vmatpush1.msra.mxu0 %v101
    %167 = vmatprep.subr.mxu0 %v104
    %168 = vmatpush1.msra.mxu0 %v103
    %169 = vmatprep.subr.mxu0 %v106
    %170 = vmatpush1.msra.mxu0 %v105
    %171 = vmatprep.subr.mxu0 %v108
    %172 = vmatpush1.msra.mxu0 %v107
    %173 = vmatprep.subr.mxu0 %v110
    %174 = vmatpush1.msra.mxu0 %v109
    %175 = vmatprep.subr.mxu0 %v112
    %176 = vmatpush1.msra.mxu0 %v111
    %177 = vmatprep.subr.mxu0 %v114
    %178 = vmatpush1.msra.mxu0 %v113
    %179 = vmatprep.mubr.f32.mxu0 %v44
    %180 = vmatmul.mubr.f32.gmra.mrb[0].mxu0 %v43
    %v181 = vpop.f32.mrb[0].mxu0
    %v182 = vadd.f32 0.0, %v181
    %v183 = vpop.f32.mrb[0].mxu0
    %v184 = vadd.f32 0.0, %v183
    %185 = vmatprep.mubr.f32.mxu0 %v46
    %186 = vmatmul.mubr.f32.gmra.mrb[0].mxu0 %v45
    %v187 = vpop.f32.mrb[0].mxu0
    %v188 = vadd.f32 0.0, %v187
    %v189 = vpop.f32.mrb[0].mxu0
    %v190 = vadd.f32 0.0, %v189
    %191 = vdwg.mxu0
    %v192 = vadd.f32 %v47, %v182
    %v193 = vadd.f32 %v48, %v184
    %v194 = vadd.f32 %v49, %v188
    %v195 = vadd.f32 %v50, %v190
    %196 = vst [vmem:[#allocation2] sm:$0xff] %v192
    %197 = vst [vmem:[#allocation2 + $0x8] sm:$0xff] %v193
    %198 = vst [vmem:[#allocation2 + $0x10] sm:$0xff] %v194
    %199 = vst [vmem:[#allocation2 + $0x18] sm:$0xff] %v195
    %p200 = scmp.eq.s32.totalorder 0, 0
    %p201 = pnand %p200, %p35
    %p202 = pneg %p201
    // Predicated region
    $region30: #{tpu_custom_call.1} parent=1 // pred_check
      _
    $region31: #{tpu_custom_call.1} parent=1 // pred_check_branch
      %204 = sbr.rel (%p201) target = $region33
    $region32: #{tpu_custom_call.1} parent=1 // pred_region
      %vm205 = vcmask 64512
      %206 = vst.msk [vmem:[#allocation3] sm:$0xff] %vm205, 0.0
      %207 = vst.msk [vmem:[#allocation3 + $0x8] sm:$0xff] %vm205, 0.0
    $region33: #{tpu_custom_call.1} parent=1 // pred_fallthru
      _
    // Predicated region
    $region34: #{tpu_custom_call.1} parent=1 // pred_check
      %p208 = pneg %p200
    $region35: #{tpu_custom_call.1} parent=1 // pred_check_branch
      %210 = sbr.rel (%p208) target = $region37
    $region36: #{tpu_custom_call.1} parent=1 // pred_region
      %v211 = vld [vmem:[#allocation3] sm:$0xff]
      %v212 = vld [vmem:[#allocation3 + $0x8] sm:$0xff]
      %v213 = vld [vmem:[%s3] sm:$0xff]
      %v214 = vld [vmem:[%s3 + $0x8] sm:$0xff]
      %v215 = vld [vmem:[%s3 + $0x10] sm:$0xff]
      %v216 = vld [vmem:[%s3 + $0x18] sm:$0xff]
      %v217 = vld [vmem:[%s3 + $0x20] sm:$0xff]
      %v218 = vld [vmem:[%s3 + $0x28] sm:$0xff]
      %v219 = vld [vmem:[%s3 + $0x30] sm:$0xff]
      %v220 = vld [vmem:[%s3 + $0x38] sm:$0xff]
      %v221 = vld [vmem:[%s3 + $0x40] sm:$0xff]
      %v222 = vld [vmem:[%s3 + $0x48] sm:$0xff]
      %v223 = vld [vmem:[%s3 + $0x50] sm:$0xff]
      %v224 = vld [vmem:[%s3 + $0x58] sm:$0xff]
      %v225 = vld [vmem:[%s3 + $0x60] sm:$0xff]
      %v226 = vld [vmem:[%s3 + $0x68] sm:$0xff]
      %v227 = vld [vmem:[%s3 + $0x70] sm:$0xff]
      %v228 = vld [vmem:[%s3 + $0x78] sm:$0xff]
      %v229 = vld [vmem:[%s3 + $0x80] sm:$0xff]
      %v230 = vld [vmem:[%s3 + $0x88] sm:$0xff]
      %v231 = vld [vmem:[%s3 + $0x90] sm:$0xff]
      %v232 = vld [vmem:[%s3 + $0x98] sm:$0xff]
      %v233 = vld [vmem:[%s3 + $0xa0] sm:$0xff]
      %v234 = vld [vmem:[%s3 + $0xa8] sm:$0xff]
      %v235 = vld [vmem:[%s3 + $0xb0] sm:$0xff]
      %v236 = vld [vmem:[%s3 + $0xb8] sm:$0xff]
      %v237 = vld [vmem:[%s3 + $0xc0] sm:$0xff]
      %v238 = vld [vmem:[%s3 + $0xc8] sm:$0xff]
      %v239 = vld [vmem:[%s3 + $0xd0] sm:$0xff]
      %v240 = vld [vmem:[%s3 + $0xd8] sm:$0xff]
      %v241 = vld [vmem:[%s3 + $0xe0] sm:$0xff]
      %v242 = vld [vmem:[%s3 + $0xe8] sm:$0xff]
      %v243 = vld [vmem:[%s3 + $0xf0] sm:$0xff]
      %v244 = vld [vmem:[%s3 + $0xf8] sm:$0xff]
      %245 = vmatprep.subr.mxu0 0.0
      %246 = vmatpush1.msra.mxu0 %v213
      %247 = vmatprep.subr.mxu0 0.0
      %248 = vmatpush1.msra.mxu0 %v214
      %249 = vmatprep.subr.mxu0 0.0
      %250 = vmatpush1.msra.mxu0 %v215
      %251 = vmatprep.subr.mxu0 0.0
      %252 = vmatpush1.msra.mxu0 %v216
      %253 = vmatprep.subr.mxu0 0.0
      %254 = vmatpush1.msra.mxu0 %v217
      %255 = vmatprep.subr.mxu0 0.0
      %256 = vmatpush1.msra.mxu0 %v218
      %257 = vmatprep.subr.mxu0 0.0
      %258 = vmatpush1.msra.mxu0 %v219
      %259 = vmatprep.subr.mxu0 0.0
      %260 = vmatpush1.msra.mxu0 %v220
      %261 = vmatprep.subr.mxu0 0.0
      %262 = vmatpush1.msra.mxu0 %v221
      %263 = vmatprep.subr.mxu0 0.0
      %264 = vmatpush1.msra.mxu0 %v222
      %265 = vmatprep.subr.mxu0 0.0
      %266 = vmatpush1.msra.mxu0 %v223
      %267 = vmatprep.subr.mxu0 0.0
      %268 = vmatpush1.msra.mxu0 %v224
      %269 = vmatprep.subr.mxu0 0.0
      %270 = vmatpush1.msra.mxu0 %v225
      %271 = vmatprep.subr.mxu0 0.0
      %272 = vmatpush1.msra.mxu0 %v226
      %273 = vmatprep.subr.mxu0 0.0
      %274 = vmatpush1.msra.mxu0 %v227
      %275 = vmatprep.subr.mxu0 0.0
      %276 = vmatpush1.msra.mxu0 %v228
      %277 = vmatprep.subr.mxu0 0.0
      %278 = vmatpush1.msra.mxu0 %v229
      %279 = vmatprep.subr.mxu0 0.0
      %280 = vmatpush1.msra.mxu0 %v230
      %281 = vmatprep.subr.mxu0 0.0
      %282 = vmatpush1.msra.mxu0 %v231
      %283 = vmatprep.subr.mxu0 0.0
      %284 = vmatpush1.msra.mxu0 %v232
      %285 = vmatprep.subr.mxu0 0.0
      %286 = vmatpush1.msra.mxu0 %v233
      %287 = vmatprep.subr.mxu0 0.0
      %288 = vmatpush1.msra.mxu0 %v234
      %289 = vmatprep.subr.mxu0 0.0
      %290 = vmatpush1.msra.mxu0 %v235
      %291 = vmatprep.subr.mxu0 0.0
      %292 = vmatpush1.msra.mxu0 %v236
      %293 = vmatprep.subr.mxu0 0.0
      %294 = vmatpush1.msra.mxu0 %v237
      %295 = vmatprep.subr.mxu0 0.0
      %296 = vmatpush1.msra.mxu0 %v238
      %297 = vmatprep.subr.mxu0 0.0
      %298 = vmatpush1.msra.mxu0 %v239
      %299 = vmatprep.subr.mxu0 0.0
      %300 = vmatpush1.msra.mxu0 %v240
      %301 = vmatprep.subr.mxu0 0.0
      %302 = vmatpush1.msra.mxu0 %v241
      %303 = vmatprep.subr.mxu0 0.0
      %304 = vmatpush1.msra.mxu0 %v242
      %305 = vmatprep.subr.mxu0 0.0
      %306 = vmatpush1.msra.mxu0 %v243
      %307 = vmatprep.subr.mxu0 0.0
      %308 = vmatpush1.msra.mxu0 %v244
      %309 = vmatprep.mubr.f32.mxu0 %v44
      %310 = vmatmul.mubr.f32.gmra.mrb[0].mxu0 %v43
      %v311 = vpop.f32.mrb[0].mxu0
      %v312 = vadd.f32 0.0, %v311
      %v313 = vpop.f32.mrb[0].mxu0
      %314 = vmatprep.mubr.f32.mxu0 %v46
      %315 = vmatmul.mubr.f32.gmra.mrb[0].mxu0 %v45
      %v316 = vpop.f32.mrb[0].mxu0
      %v317 = vadd.f32 0.0, %v316
      %v318 = vpop.f32.mrb[0].mxu0
      %319 = vdwg.mxu0
      %v320 = vadd.f32 %v211, %v312
      %v321 = vadd.f32 %v212, %v317
      %vm322 = vcmask 64512
      %323 = vst.msk [vmem:[#allocation3] sm:$0xff] %vm322, %v320
      %324 = vst.msk [vmem:[#allocation3 + $0x8] sm:$0xff] %vm322, %v321
    $region37: #{tpu_custom_call.1} parent=1 // pred_fallthru
      _
    // Predicated region
    $region38: #{tpu_custom_call.1} parent=1 // pred_check
      %p325 = pneg %p35
    $region39: #{tpu_custom_call.1} parent=1 // pred_check_branch
      %327 = sbr.rel (%p325) target = $region41
    $region40: #{tpu_custom_call.1} parent=1 // pred_region
      %v328 = vld [vmem:[#allocation3] sm:$0xff]
      %v329 = vld [vmem:[#allocation3 + $0x8] sm:$0xff]
      %v330 = vld [vmem:[%s4] sm:$0xff]
      %v331 = vld [vmem:[%s4 + $0x8] sm:$0xff]
      %vm332 = vcmask 64512
      %v334 = vsel %vm332, %v328, 0
      %v337 = vsel %vm332, %v329, 0
      %339 = vmatprep.subr.mxu0 %v331
      %340 = vmatpush1.msra.mxu0 %v330
      %341 = vmatprep.subr.mxu0 0.0
      %342 = vmatpush1.msra.mxu0 0.0
      %343 = vmatprep.subr.mxu0 0.0
      %344 = vmatpush1.msra.mxu0 0.0
      %345 = vmatprep.subr.mxu0 0.0
      %346 = vmatpush1.msra.mxu0 0.0
      %347 = vmatprep.subr.mxu0 0.0
      %348 = vmatpush1.msra.mxu0 0.0
      %349 = vmatprep.subr.mxu0 0.0
      %350 = vmatpush1.msra.mxu0 0.0
      %351 = vmatprep.subr.mxu0 0.0
      %352 = vmatpush1.msra.mxu0 0.0
      %353 = vmatprep.subr.mxu0 0.0
      %354 = vmatpush1.msra.mxu0 0.0
      %355 = vmatprep.subr.mxu0 0.0
      %356 = vmatpush1.msra.mxu0 0.0
      %357 = vmatprep.subr.mxu0 0.0
      %358 = vmatpush1.msra.mxu0 0.0
      %359 = vmatprep.subr.mxu0 0.0
      %360 = vmatpush1.msra.mxu0 0.0
      %361 = vmatprep.subr.mxu0 0.0
      %362 = vmatpush1.msra.mxu0 0.0
      %363 = vmatprep.subr.mxu0 0.0
      %364 = vmatpush1.msra.mxu0 0.0
      %365 = vmatprep.subr.mxu0 0.0
      %366 = vmatpush1.msra.mxu0 0.0
      %367 = vmatprep.subr.mxu0 0.0
      %368 = vmatpush1.msra.mxu0 0.0
      %369 = vmatprep.subr.mxu0 0.0
      %370 = vmatpush1.msra.mxu0 0.0
      %371 = vmatprep.subr.mxu0 0.0
      %372 = vmatpush1.msra.mxu0 0.0
      %373 = vmatprep.subr.mxu0 0.0
      %374 = vmatpush1.msra.mxu0 0.0
      %375 = vmatprep.subr.mxu0 0.0
      %376 = vmatpush1.msra.mxu0 0.0
      %377 = vmatprep.subr.mxu0 0.0
      %378 = vmatpush1.msra.mxu0 0.0
      %379 = vmatprep.subr.mxu0 0.0
      %380 = vmatpush1.msra.mxu0 0.0
      %381 = vmatprep.subr.mxu0 0.0
      %382 = vmatpush1.msra.mxu0 0.0
      %383 = vmatprep.subr.mxu0 0.0
      %384 = vmatpush1.msra.mxu0 0.0
      %385 = vmatprep.subr.mxu0 0.0
      %386 = vmatpush1.msra.mxu0 0.0
      %387 = vmatprep.subr.mxu0 0.0
      %388 = vmatpush1.msra.mxu0 0.0
      %389 = vmatprep.subr.mxu0 0.0
      %390 = vmatpush1.msra.mxu0 0.0
      %391 = vmatprep.subr.mxu0 0.0
      %392 = vmatpush1.msra.mxu0 0.0
      %393 = vmatprep.subr.mxu0 0.0
      %394 = vmatpush1.msra.mxu0 0.0
      %395 = vmatprep.subr.mxu0 0.0
      %396 = vmatpush1.msra.mxu0 0.0
      %397 = vmatprep.subr.mxu0 0.0
      %398 = vmatpush1.msra.mxu0 0.0
      %399 = vmatprep.subr.mxu0 0.0
      %400 = vmatpush1.msra.mxu0 0.0
      %401 = vmatprep.subr.mxu0 0.0
      %402 = vmatpush1.msra.mxu0 0.0
      %403 = vmatprep.mubr.f32.mxu0 0.0
      %404 = vmatmul.mubr.f32.gmra.mrb[0].mxu0 %v334
      %v405 = vpop.f32.mrb[0].mxu0
      %v406 = vadd.f32 0.0, %v405
      %v407 = vpop.f32.mrb[0].mxu0
      %v408 = vadd.f32 0.0, %v407
      %409 = vmatprep.mubr.f32.mxu0 0.0
      %410 = vmatmul.mubr.f32.gmra.mrb[0].mxu0 %v337
      %v411 = vpop.f32.mrb[0].mxu0
      %v412 = vadd.f32 0.0, %v411
      %v413 = vpop.f32.mrb[0].mxu0
      %v414 = vadd.f32 0.0, %v413
      %415 = vdwg.mxu0
      %v416 = vld [vmem:[#allocation2] sm:$0xff]
      %v417 = vld [vmem:[#allocation2 + $0x8] sm:$0xff]
      %v418 = vld [vmem:[#allocation2 + $0x10] sm:$0xff]
      %v419 = vld [vmem:[#allocation2 + $0x18] sm:$0xff]
      %v420 = vadd.f32 %v416, %v406
      %v421 = vadd.f32 %v417, %v408
      %v422 = vadd.f32 %v418, %v412
      %v423 = vadd.f32 %v419, %v414
      %v424 = vld [vmem:[%s2] sm:$0x3]
      %v426 = vlaneseq
      %v427 = vshrl.u32 %v426, 7
      %v428 = vsub.s32 0, %v427
      %v429 = vrot.slane %v424, %v428
      %v430 = vlaneseq
      %v431 = vshrl.u32 %v430, 7
      %v432 = vsub.s32 1, %v431
      %v433 = vrot.slane %v424, %v432
      %v436 = vadd.f32 %v420, %v429
      %v437 = vadd.f32 %v421, %v433
      %v438 = vadd.f32 %v422, %v429
      %v439 = vadd.f32 %v423, %v433
      %440 = vst [vmem:[#allocation7] sm:$0xff] %v436
      %441 = vst [vmem:[#allocation7 + $0x8] sm:$0xff] %v437
      %442 = vst [vmem:[#allocation7 + $0x10] sm:$0xff] %v438
      %443 = vst [vmem:[#allocation7 + $0x18] sm:$0xff] %v439
    $region41: #{tpu_custom_call.1} parent=1 // pred_fallthru
      _
    // Predicated region
    $region42: #{tpu_custom_call.1} parent=1 // pred_check
      _
    $region43: #{tpu_custom_call.1} parent=1 // pred_check_branch
      %445 = sbr.rel (0) target = $region45
    $region44: #{tpu_custom_call.1} parent=1 // pred_region
      %s447 = ssub.s32 512, 512
      %448 = vsyncadd [#allocation6], %s447
      %s449 = sshll.u32 [#allocation7], 4
      %s450 = int_to_ptr.vmem [resolvable:$true] %s449
      %455 = dma.vmem_to_hbm [thread:$0]  %s450, 512, %s5, [#allocation6], 256, 256, 16
    $region45: #{tpu_custom_call.1} parent=1 // pred_fallthru
      _
    // Predicated region
    $region46: #{tpu_custom_call.1} parent=1 // pred_check
      _
    $region47: #{tpu_custom_call.1} parent=1 // pred_check_branch
      %457 = sbr.rel (0) target = $region49
    $region48: #{tpu_custom_call.1} parent=1 // pred_region
      %458 = dma.done [#allocation6], 512
    $region49: #{tpu_custom_call.1} parent=1 // pred_fallthru
      _
    %459 = vsyncpa [#allocation5], 1
    %460 = vsyncpa [#allocation6], 1

</llo_original>
